<compile_context>
chip_gen: v6e
topology: v6e:2x2x1
jax: 0.10.0
libtpu: 0.0.40
codegen_flags: <defaults>
</compile_context>

<pallas_src>
import functools

import numpy as np
import jax
import jax.numpy as jnp
from jax import lax
from jax.experimental import pallas as pl
from jax.experimental.pallas import tpu as pltpu

K = 4            # conv kernel size (kernel_size=4, stride=2, padding=1 in both convs)
LANE = 128
SUBLANE = 8
_VMEM_LIMIT = 48 * 1024 * 1024     # < 64 MiB physical VMEM on v7x
_TILE_BUDGET = 24 * 1024 * 1024    # double-buffered (input + output) tile budget


def _round_up(a, b):
    return (a + b - 1) // b * b


def _pick_tm(m, k_cols, out_cols, in_itemsize):
    """Row-tile size: biggest multiple of 8 whose double-buffered tiles fit budget."""
    per_row = 2 * (k_cols * in_itemsize + out_cols * 4)
    tm = _TILE_BUDGET // max(per_row, 1)
    tm = max(SUBLANE, min(1024, (tm // SUBLANE) * SUBLANE))
    tm = min(tm, _round_up(m, SUBLANE))
    return tm


# ------------------------- Pallas kernels -------------------------

def _down_kernel(p_ref, w_ref, o_ref):
    # Fused: LeakyReLU(0.2) on the im2col'd input (leaky(0)==0 so zero padding is
    # unaffected, f32 VPU), Conv2d(4,2,1)-as-matmul on the MXU (f32 accumulation),
    # then the ReLU that starts the "up" path.
    p = p_ref[...].astype(jnp.float32)
    p = jnp.where(p >= 0, p, 0.2 * p)
    acc = jnp.dot(p.astype(w_ref.dtype), w_ref[...],
                  preferred_element_type=jnp.float32)
    o_ref[...] = jnp.maximum(acc, 0.0)


def _up_stats_kernel(p_ref, w_ref, t_ref, stat_ref):
    # Phase-decomposed ConvTranspose2d(4,2,1)-as-matmul (all 4 output phases in one
    # lane-dense matmul) plus per-tile partial BatchNorm statistics:
    #   stat row 0 = per-column sum, row 1 = per-column sum of squares (f32).
    t = jnp.dot(p_ref[...].astype(w_ref.dtype), w_ref[...],
                preferred_element_type=jnp.float32)
    t_ref[...] = t
    s = jnp.sum(t, axis=0, keepdims=True)
    q = jnp.sum(t * t, axis=0, keepdims=True)
    rows = lax.broadcasted_iota(jnp.int32, stat_ref.shape, 0)
    stat_ref[...] = jnp.where(rows == 0, s, jnp.where(rows == 1, q, 0.0))


def _bn_norm_kernel(t_ref, scale_ref, shift_ref, y_ref):
    # Second BN pass: per-column affine (scale/shift already fold gamma, beta,
    # mean and rsqrt(var+eps)).
    y_ref[...] = t_ref[...] * scale_ref[...] + shift_ref[...]


# ------------------------- im2col / weight glue -------------------------

def _conv_patches(x_nhwc, cin):
    # 4x4 / stride-2 / pad-1 Conv2d patches: (N*Ho*Wo, 16*Cin); kh-major, kw,
    # channel innermost (matches the weight-matrix reshape).
    n, h, w, _ = x_nhwc.shape
    ho, wo = h // 2, w // 2
    xp = jnp.pad(x_nhwc, ((0, 0), (1, 1), (1, 1), (0, 0)))
    cols = [xp[:, kh:kh + 2 * ho:2, kw:kw + 2 * wo:2, :]
            for kh in range(K) for kw in range(K)]
    p = jnp.stack(cols, axis=3)                       # (N, Ho, Wo, 16, Cin)
    return p.reshape(n * ho * wo, K * K * cin)


def _upconv_patches(u_img, cm):
    # 3x3 neighbourhood of the down-path activation u: each row feeds all four
    # output phases of the 4x4/stride-2 ConvTranspose2d at once (no zero-dilation).
    n, ho, wo, _ = u_img.shape
    up = jnp.pad(u_img, ((0, 0), (1, 1), (1, 1), (0, 0)))
    cols = [up[:, 1 + dh:1 + dh + ho, 1 + dw:1 + dw + wo, :]
            for dh in (-1, 0, 1) for dw in (-1, 0, 1)]
    p = jnp.stack(cols, axis=3)                       # (N, Ho, Wo, 9, Cm)
    return p.reshape(n * ho * wo, 9 * cm)


# kernel-tap index used by output phase ph (row or col) at input offset d.
_KH_MAP = {(0, 0): 1, (0, -1): 3, (1, 1): 0, (1, 0): 2}


def _build_up_weight(w_up_t):
    # w_up_t: (Cm, Cout, 4, 4) ConvTranspose2d weight (in, out, kh, kw).
    # Returns the (9*Cm, 4*Cout) phase-decomposed matrix: column block (ph*2+pw)
    # produces the output pixels at spatial phase (2i+ph, 2j+pw).
    cm, cout = w_up_t.shape[0], w_up_t.shape[1]
    wm = jnp.zeros((9 * cm, 4 * cout), jnp.float32)
    for ph in range(2):
        for pw in range(2):
            for dh in (-1, 0, 1):
                for dw in (-1, 0, 1):
                    if (ph, dh) not in _KH_MAP or (pw, dw) not in _KH_MAP:
                        continue
                    kh, kw = _KH_MAP[(ph, dh)], _KH_MAP[(pw, dw)]
                    r0 = ((dh + 1) * 3 + (dw + 1)) * cm
                    c0 = (ph * 2 + pw) * cout
                    wm = wm.at[r0:r0 + cm, c0:c0 + cout].set(w_up_t[:, :, kh, kw])
    return wm


# ------------------------- tiled pallas_call wrappers -------------------------

def _down_call(patches, w_mat, compute_dtype):
    m, kd = patches.shape
    cm_pad = w_mat.shape[1]
    itemsize = np.dtype(compute_dtype).itemsize
    tm = _pick_tm(m, kd, cm_pad, itemsize)
    m_pad = _round_up(m, tm)
    patches = jnp.pad(patches, ((0, m_pad - m), (0, 0))).astype(compute_dtype)
    flops = 2 * m_pad * kd * cm_pad
    bytes_acc = (m_pad * kd + kd * cm_pad) * itemsize + m_pad * cm_pad * 4
    u = pl.pallas_call(
        _down_kernel,
        out_shape=jax.ShapeDtypeStruct((m_pad, cm_pad), jnp.float32),
        grid=(m_pad // tm,),
        in_specs=[pl.BlockSpec((tm, kd), lambda i: (i, 0)),
                  pl.BlockSpec((kd, cm_pad), lambda i: (0, 0))],
        out_specs=pl.BlockSpec((tm, cm_pad), lambda i: (i, 0)),
        compiler_params=pltpu.CompilerParams(
            dimension_semantics=("parallel",),
            vmem_limit_bytes=_VMEM_LIMIT),
        cost_estimate=pl.CostEstimate(flops=flops, transcendentals=0,
                                      bytes_accessed=bytes_acc),
    )(patches, w_mat.astype(compute_dtype))
    return u[:m]


def _up_call(patches, w_mat, compute_dtype):
    m, ku = patches.shape
    c4_pad = w_mat.shape[1]
    itemsize = np.dtype(compute_dtype).itemsize
    tm = _pick_tm(m, ku, c4_pad, itemsize)
    m_pad = _round_up(m, tm)
    ntiles = m_pad // tm
    patches = jnp.pad(patches, ((0, m_pad - m), (0, 0))).astype(compute_dtype)
    flops = 2 * m_pad * ku * c4_pad
    bytes_acc = ((m_pad * ku + ku * c4_pad) * itemsize
                 + (m_pad + ntiles * SUBLANE) * c4_pad * 4)
    t, stats = pl.pallas_call(
        _up_stats_kernel,
        out_shape=(jax.ShapeDtypeStruct((m_pad, c4_pad), jnp.float32),
                   jax.ShapeDtypeStruct((ntiles * SUBLANE, c4_pad), jnp.float32)),
        grid=(ntiles,),
        in_specs=[pl.BlockSpec((tm, ku), lambda i: (i, 0)),
                  pl.BlockSpec((ku, c4_pad), lambda i: (0, 0))],
        out_specs=(pl.BlockSpec((tm, c4_pad), lambda i: (i, 0)),
                   pl.BlockSpec((SUBLANE, c4_pad), lambda i: (i, 0))),
        compiler_params=pltpu.CompilerParams(
            dimension_semantics=("parallel",),
            vmem_limit_bytes=_VMEM_LIMIT),
        cost_estimate=pl.CostEstimate(flops=flops, transcendentals=0,
                                      bytes_accessed=bytes_acc),
    )(patches, w_mat.astype(compute_dtype))
    return t, stats.reshape(ntiles, SUBLANE, c4_pad), tm


def _bn_norm_call(t, scale, shift, tm):
    m_pad, c4_pad = t.shape
    ntiles = m_pad // tm
    return pl.pallas_call(
        _bn_norm_kernel,
        out_shape=jax.ShapeDtypeStruct((m_pad, c4_pad), jnp.float32),
        grid=(ntiles,),
        in_specs=[pl.BlockSpec((tm, c4_pad), lambda i: (i, 0)),
                  pl.BlockSpec((1, c4_pad), lambda i: (0, 0)),
                  pl.BlockSpec((1, c4_pad), lambda i: (0, 0))],
        out_specs=pl.BlockSpec((tm, c4_pad), lambda i: (i, 0)),
        compiler_params=pltpu.CompilerParams(
            dimension_semantics=("parallel",),
            vmem_limit_bytes=_VMEM_LIMIT),
        cost_estimate=pl.CostEstimate(flops=2 * m_pad * c4_pad, transcendentals=0,
                                      bytes_accessed=2 * m_pad * c4_pad * 4),
    )(t, scale, shift)


# ------------------------- module forward -------------------------

def unet_innermost_block(x, w_down, w_up_t, gamma, beta,
                         compute_dtype=jnp.float32):
    # x:      (N, Cin, H, W)              NCHW, Cin == outer_nc (input_nc=None)
    # w_down: (inner_nc, Cin, 4, 4)       Conv2d weight, OIHW
    # w_up_t: (inner_nc, outer_nc, 4, 4)  ConvTranspose2d weight (in, out, kh, kw)
    n, cin, h, w = x.shape
    cm = w_down.shape[0]
    cout = w_up_t.shape[1]
    ho, wo = h // 2, w // 2
    m_dn = n * ho * wo

    kd, kd_pad = K * K * cin, _round_up(K * K * cin, LANE)
    cm_pad = _round_up(cm, LANE)
    ku, ku_pad = 9 * cm, _round_up(9 * cm, LANE)
    c4, c4_pad = 4 * cout, _round_up(4 * cout, LANE)

    # ---- down path: LeakyReLU -> Conv2d(4,2,1) -> ReLU (one fused kernel) ----
    x_nhwc = jnp.transpose(x, (0, 2, 3, 1)).astype(jnp.float32)
    patches_dn = jnp.pad(_conv_patches(x_nhwc, cin), ((0, 0), (0, kd_pad - kd)))
    w_dn_mat = jnp.transpose(w_down, (2, 3, 1, 0)).reshape(kd, cm)
    w_dn_mat = jnp.pad(w_dn_mat, ((0, kd_pad - kd), (0, cm_pad - cm)))
    # TODO(synk): fuse the up-path patch construction into this kernel from a
    # VMEM-resident spatial tile (with halos) so `u` never round-trips through HBM.
    u_mat = _down_call(patches_dn, w_dn_mat, compute_dtype)      # (M_dn, Cm_pad)
    u_img = u_mat[:, :cm].reshape(n, ho, wo, cm)

    # ---- up path: phase-decomposed ConvTranspose2d(4,2,1) + streamed BN stats ----
    patches_up = jnp.pad(_upconv_patches(u_img, cm), ((0, 0), (0, ku_pad - ku)))
    w_up_mat = jnp.pad(_build_up_weight(w_up_t),
                       ((0, ku_pad - ku), (0, c4_pad - c4)))
    t, stats, tm_up = _up_call(patches_up, w_up_mat, compute_dtype)

    # combine per-tile partial sums (tiny, f32) -> training-mode BN scale/shift
    col_sum = jnp.sum(stats[:, 0, :c4], axis=0).reshape(4, cout)
    col_ssq = jnp.sum(stats[:, 1, :c4], axis=0).reshape(4, cout)
    count = float(n * h * w)                      # padded rows contribute zeros
    mean = jnp.sum(col_sum, axis=0) / count
    var = jnp.sum(col_ssq, axis=0) / count - mean * mean
    scale_c = gamma.astype(jnp.float32) * lax.rsqrt(var + 1e-5)
    shift_c = beta.astype(jnp.float32) - mean * scale_c
    scale = jnp.pad(jnp.tile(scale_c, 4), (0, c4_pad - c4)).reshape(1, c4_pad)
    shift = jnp.pad(jnp.tile(shift_c, 4), (0, c4_pad - c4)).reshape(1, c4_pad)

    y = _bn_norm_call(t, scale, shift, tm_up)                    # (M_pad, C4_pad)

    # interleave the four output phases back to (N, Cout, H, W)
    y = y[:m_dn, :c4].reshape(n, ho, wo, 2, 2, cout)
    y = jnp.transpose(y, (0, 1, 3, 2, 4, 5)).reshape(n, h, w, cout)
    y_nchw = jnp.transpose(y, (0, 3, 1, 2))

    # innermost block: torch.cat([x, self.model(x)], 1)
    return jnp.concatenate([x, y_nchw], axis=1)


# ------------------------- pure-JAX reference -------------------------

def reference(x, w_down, w_up_t, gamma, beta):
    hx = jnp.where(x >= 0, x, 0.2 * x)
    d = lax.conv_general_dilated(hx, w_down, (2, 2), [(1, 1), (1, 1)],
                                 dimension_numbers=('NCHW', 'OIHW', 'NCHW'))
    u = jnp.maximum(d, 0.0)
    w_up_conv = jnp.flip(jnp.transpose(w_up_t, (1, 0, 2, 3)), axis=(2, 3))
    t = lax.conv_general_dilated(u, w_up_conv, (1, 1), [(2, 2), (2, 2)],
                                 lhs_dilation=(2, 2),
                                 dimension_numbers=('NCHW', 'OIHW', 'NCHW'))
    mean = jnp.mean(t, axis=(0, 2, 3), keepdims=True)
    var = jnp.mean(jnp.square(t - mean), axis=(0, 2, 3), keepdims=True)
    y = (t - mean) / jnp.sqrt(var + 1e-5)
    y = y * gamma.reshape(1, -1, 1, 1) + beta.reshape(1, -1, 1, 1)
    return jnp.concatenate([x, y], axis=1)


# ------------------------- main -------------------------

if __name__ == "__main__":
    key = jax.random.PRNGKey(0)
    k1, k2, k3 = jax.random.split(key, 3)

    N, H, W = 2, 16, 16
    outer_nc, inner_nc = 4, 8
    input_nc = outer_nc  # input_nc=None in the module => outer_nc

    x = jax.random.normal(k1, (N, input_nc, H, W), jnp.float32)
    # Conv2d(input_nc, inner_nc, 4, 2, 1, bias=False)
    w_down = jax.random.normal(k2, (inner_nc, input_nc, K, K), jnp.float32) * 0.1
    # ConvTranspose2d(inner_nc, outer_nc, 4, 2, 1, bias=False)
    w_up_t = jax.random.normal(k3, (inner_nc, outer_nc, K, K), jnp.float32) * 0.1
    # BatchNorm2d(outer_nc) affine params at init
    gamma = jnp.ones((outer_nc,), jnp.float32)
    beta = jnp.zeros((outer_nc,), jnp.float32)

    fwd_f32 = jax.jit(functools.partial(unet_innermost_block,
                                        compute_dtype=jnp.float32))
    out = jax.block_until_ready(fwd_f32(x, w_down, w_up_t, gamma, beta))
    assert out.shape == (N, 2 * outer_nc, H, W), out.shape

    ref = reference(x, w_down, w_up_t, gamma, beta)
    err = float(jnp.max(jnp.abs(out - ref)))
    if err >= 1e-4:
        raise SystemExit(f"mismatch vs reference (f32): max abs err {err}")

    # bf16-MXU path smoke check (f32 accumulation; looser tolerance).
    fwd_bf16 = jax.jit(functools.partial(unet_innermost_block,
                                         compute_dtype=jnp.bfloat16))
    out_bf16 = jax.block_until_ready(fwd_bf16(x, w_down, w_up_t, gamma, beta))
    err_bf16 = float(jnp.max(jnp.abs(out_bf16 - ref)))
    if err_bf16 >= 1e-1:
        raise SystemExit(f"mismatch vs reference (bf16): max abs err {err_bf16}")

    print("KERNEL_OK")
</pallas_src>

<mosaic_0001>
module attributes {stable_mosaic.version = 11 : i64} {
  func.func @_down_kernel(%arg0: i32, %arg1: memref<128x128xf32, #tpu.memory_space<vmem>>, %arg2: memref<128x128xf32, #tpu.memory_space<vmem>>, %arg3: memref<128x128xf32, #tpu.memory_space<vmem>>) attributes {dimension_semantics = [#tpu.dimension_semantics<parallel>], iteration_bounds = array<i64: 1>, scalar_prefetch = 0 : i64, scratch_operands = 0 : i64, tpu.core_type = #tpu.core_type<tc>, window_params = [{transform_indices = @transform_0, window_bounds = array<i64: 128, 128>}, {pipeline_mode = #tpu.pipeline_mode<synchronous>, transform_indices = @transform_1, window_bounds = array<i64: 128, 128>}, {transform_indices = @transform_2, window_bounds = array<i64: 128, 128>}]} {
    %c0 = arith.constant 0 : index
    %c0_0 = arith.constant 0 : index
    %0 = vector.load %arg1[%c0, %c0_0] : memref<128x128xf32, #tpu.memory_space<vmem>>, vector<128x128xf32>
    %cst = arith.constant 0.000000e+00 : f32
    %1 = vector.broadcast %cst : f32 to vector<128x128xf32>
    %2 = arith.cmpf oge, %0, %1 : vector<128x128xf32>
    %cst_1 = arith.constant 2.000000e-01 : f32
    %3 = vector.broadcast %cst_1 : f32 to vector<128x128xf32>
    %4 = arith.mulf %3, %0 : vector<128x128xf32>
    %5 = arith.select %2, %0, %4 : vector<128x128xi1>, vector<128x128xf32>
    %c0_2 = arith.constant 0 : index
    %c0_3 = arith.constant 0 : index
    %6 = vector.load %arg2[%c0_2, %c0_3] : memref<128x128xf32, #tpu.memory_space<vmem>>, vector<128x128xf32>
    %cst_4 = arith.constant dense<0.000000e+00> : vector<128x128xf32>
    %7 = tpu.matmul %5, %6, %cst_4 {dimension_numbers = #tpu.dot_dimension_numbers<[1], [0], [0], [1], [0, 0, 1, 1], [], []>} : vector<128x128xf32>, vector<128x128xf32>, vector<128x128xf32> -> vector<128x128xf32>
    %cst_5 = arith.constant 0.000000e+00 : f32
    %8 = vector.broadcast %cst_5 : f32 to vector<128x128xf32>
    %9 = arith.maximumf %7, %8 : vector<128x128xf32>
    %c0_6 = arith.constant 0 : index
    %c0_7 = arith.constant 0 : index
    %10 = vector.load %arg3[%c0_6, %c0_7] : memref<128x128xf32, #tpu.memory_space<vmem>>, vector<128x128xf32>
    tpu.vector_store %arg3[%c0_6, %c0_7], %9 {strides = array<i32>} : memref<128x128xf32, #tpu.memory_space<vmem>>, vector<128x128xf32>,
    return
  }
  func.func @transform_0(%arg0: i32) -> (i32, i32) {
    %c0_i32 = arith.constant 0 : i32
    %c0_i32_0 = arith.constant 0 : i32
    return %arg0, %c0_i32 : i32, i32
  }
  func.func @transform_1(%arg0: i32) -> (i32, i32) {
    %c0_i32 = arith.constant 0 : i32
    %c0_i32_0 = arith.constant 0 : i32
    %c0_i32_1 = arith.constant 0 : i32
    return %c0_i32, %c0_i32_0 : i32, i32
  }
  func.func @transform_2(%arg0: i32) -> (i32, i32) {
    %c0_i32 = arith.constant 0 : i32
    %c0_i32_0 = arith.constant 0 : i32
    return %arg0, %c0_i32 : i32, i32
  }
}

module attributes {stable_mosaic.version = 11 : i64} {
  func.func @_up_stats_kernel(%arg0: i32, %arg1: memref<128x128xf32, #tpu.memory_space<vmem>>, %arg2: memref<128x128xf32, #tpu.memory_space<vmem>>, %arg3: memref<128x128xf32, #tpu.memory_space<vmem>>, %arg4: memref<8x128xf32, #tpu.memory_space<vmem>>) attributes {dimension_semantics = [#tpu.dimension_semantics<parallel>], iteration_bounds = array<i64: 1>, scalar_prefetch = 0 : i64, scratch_operands = 0 : i64, tpu.core_type = #tpu.core_type<tc>, window_params = [{transform_indices = @transform_0, window_bounds = array<i64: 128, 128>}, {pipeline_mode = #tpu.pipeline_mode<synchronous>, transform_indices = @transform_1, window_bounds = array<i64: 128, 128>}, {transform_indices = @transform_2, window_bounds = array<i64: 128, 128>}, {transform_indices = @transform_3, window_bounds = array<i64: 8, 128>}]} {
    %c0 = arith.constant 0 : index
    %c0_0 = arith.constant 0 : index
    %0 = vector.load %arg1[%c0, %c0_0] : memref<128x128xf32, #tpu.memory_space<vmem>>, vector<128x128xf32>
    %c0_1 = arith.constant 0 : index
    %c0_2 = arith.constant 0 : index
    %1 = vector.load %arg2[%c0_1, %c0_2] : memref<128x128xf32, #tpu.memory_space<vmem>>, vector<128x128xf32>
    %cst = arith.constant dense<0.000000e+00> : vector<128x128xf32>
    %2 = tpu.matmul %0, %1, %cst {dimension_numbers = #tpu.dot_dimension_numbers<[1], [0], [0], [1], [0, 0, 1, 1], [], []>} : vector<128x128xf32>, vector<128x128xf32>, vector<128x128xf32> -> vector<128x128xf32>
    %c0_3 = arith.constant 0 : index
    %c0_4 = arith.constant 0 : index
    %3 = vector.load %arg3[%c0_3, %c0_4] : memref<128x128xf32, #tpu.memory_space<vmem>>, vector<128x128xf32>
    tpu.vector_store %arg3[%c0_3, %c0_4], %2 {strides = array<i32>} : memref<128x128xf32, #tpu.memory_space<vmem>>, vector<128x128xf32>,
    %cst_5 = arith.constant dense<0.000000e+00> : vector<128xf32>
    %4 = vector.multi_reduction <add>, %2, %cst_5 [0] : vector<128x128xf32> to vector<128xf32>
    %5 = vector.shape_cast %4 : vector<128xf32> to vector<1x128xf32>
    %6 = arith.mulf %2, %2 : vector<128x128xf32>
    %cst_6 = arith.constant dense<0.000000e+00> : vector<128xf32>
    %7 = vector.multi_reduction <add>, %6, %cst_6 [0] : vector<128x128xf32> to vector<128xf32>
    %8 = vector.shape_cast %7 : vector<128xf32> to vector<1x128xf32>
    %9 = tpu.iota {dimensions = array<i32: 0>} : vector<8x128xi32>
    %c0_i32 = arith.constant 0 : i32
    %10 = vector.broadcast %c0_i32 : i32 to vector<8x128xi32>
    %11 = arith.cmpi eq, %9, %10 : vector<8x128xi32>
    %c1_i32 = arith.constant 1 : i32
    %12 = vector.broadcast %c1_i32 : i32 to vector<8x128xi32>
    %13 = arith.cmpi eq, %9, %12 : vector<8x128xi32>
    %cst_7 = arith.constant 0.000000e+00 : f32
    %14 = vector.shape_cast %8 : vector<1x128xf32> to vector<1x128xf32>
    %15 = vector.broadcast %14 : vector<1x128xf32> to vector<8x128xf32>
    %16 = vector.broadcast %cst_7 : f32 to vector<8x128xf32>
    %17 = arith.select %13, %15, %16 : vector<8x128xi1>, vector<8x128xf32>
    %18 = vector.shape_cast %5 : vector<1x128xf32> to vector<1x128xf32>
    %19 = vector.broadcast %18 : vector<1x128xf32> to vector<8x128xf32>
    %20 = arith.select %11, %19, %17 : vector<8x128xi1>, vector<8x128xf32>
    %c0_8 = arith.constant 0 : index
    %c0_9 = arith.constant 0 : index
    %21 = vector.load %arg4[%c0_8, %c0_9] : memref<8x128xf32, #tpu.memory_space<vmem>>, vector<8x128xf32>
    tpu.vector_store %arg4[%c0_8, %c0_9], %20 {strides = array<i32>} : memref<8x128xf32, #tpu.memory_space<vmem>>, vector<8x128xf32>,
    return
  }
  func.func @transform_0(%arg0: i32) -> (i32, i32) {
    %c0_i32 = arith.constant 0 : i32
    %c0_i32_0 = arith.constant 0 : i32
    return %arg0, %c0_i32 : i32, i32
  }
  func.func @transform_1(%arg0: i32) -> (i32, i32) {
    %c0_i32 = arith.constant 0 : i32
    %c0_i32_0 = arith.constant 0 : i32
    %c0_i32_1 = arith.constant 0 : i32
    return %c0_i32, %c0_i32_0 : i32, i32
  }
  func.func @transform_2(%arg0: i32) -> (i32, i32) {
    %c0_i32 = arith.constant 0 : i32
    %c0_i32_0 = arith.constant 0 : i32
    return %arg0, %c0_i32 : i32, i32
  }
  func.func @transform_3(%arg0: i32) -> (i32, i32) {
    %c0_i32 = arith.constant 0 : i32
    %c0_i32_0 = arith.constant 0 : i32
    return %arg0, %c0_i32 : i32, i32
  }
}

module attributes {stable_mosaic.version = 11 : i64} {
  func.func @_bn_norm_kernel(%arg0: i32, %arg1: memref<128x128xf32, #tpu.memory_space<vmem>>, %arg2: memref<1x128xf32, #tpu.memory_space<vmem>>, %arg3: memref<1x128xf32, #tpu.memory_space<vmem>>, %arg4: memref<128x128xf32, #tpu.memory_space<vmem>>) attributes {dimension_semantics = [#tpu.dimension_semantics<parallel>], iteration_bounds = array<i64: 1>, scalar_prefetch = 0 : i64, scratch_operands = 0 : i64, tpu.core_type = #tpu.core_type<tc>, window_params = [{transform_indices = @transform_0, window_bounds = array<i64: 128, 128>}, {pipeline_mode = #tpu.pipeline_mode<synchronous>, transform_indices = @transform_1, window_bounds = array<i64: 1, 128>}, {pipeline_mode = #tpu.pipeline_mode<synchronous>, transform_indices = @transform_2, window_bounds = array<i64: 1, 128>}, {transform_indices = @transform_3, window_bounds = array<i64: 128, 128>}]} {
    %c0 = arith.constant 0 : index
    %c0_0 = arith.constant 0 : index
    %0 = vector.load %arg1[%c0, %c0_0] : memref<128x128xf32, #tpu.memory_space<vmem>>, vector<128x128xf32>
    %c0_1 = arith.constant 0 : index
    %c0_2 = arith.constant 0 : index
    %1 = vector.load %arg2[%c0_1, %c0_2] : memref<1x128xf32, #tpu.memory_space<vmem>>, vector<1x128xf32>
    %2 = vector.broadcast %1 : vector<1x128xf32> to vector<128x128xf32>
    %3 = arith.mulf %0, %2 : vector<128x128xf32>
    %c0_3 = arith.constant 0 : index
    %c0_4 = arith.constant 0 : index
    %4 = vector.load %arg3[%c0_3, %c0_4] : memref<1x128xf32, #tpu.memory_space<vmem>>, vector<1x128xf32>
    %5 = vector.broadcast %4 : vector<1x128xf32> to vector<128x128xf32>
    %6 = arith.addf %3, %5 : vector<128x128xf32>
    %c0_5 = arith.constant 0 : index
    %c0_6 = arith.constant 0 : index
    %7 = vector.load %arg4[%c0_5, %c0_6] : memref<128x128xf32, #tpu.memory_space<vmem>>, vector<128x128xf32>
    tpu.vector_store %arg4[%c0_5, %c0_6], %6 {strides = array<i32>} : memref<128x128xf32, #tpu.memory_space<vmem>>, vector<128x128xf32>,
    return
  }
  func.func @transform_0(%arg0: i32) -> (i32, i32) {
    %c0_i32 = arith.constant 0 : i32
    %c0_i32_0 = arith.constant 0 : i32
    return %arg0, %c0_i32 : i32, i32
  }
  func.func @transform_1(%arg0: i32) -> (i32, i32) {
    %c0_i32 = arith.constant 0 : i32
    %c0_i32_0 = arith.constant 0 : i32
    %c0_i32_1 = arith.constant 0 : i32
    return %c0_i32, %c0_i32_0 : i32, i32
  }
  func.func @transform_2(%arg0: i32) -> (i32, i32) {
    %c0_i32 = arith.constant 0 : i32
    %c0_i32_0 = arith.constant 0 : i32
    %c0_i32_1 = arith.constant 0 : i32
    return %c0_i32, %c0_i32_0 : i32, i32
  }
  func.func @transform_3(%arg0: i32) -> (i32, i32) {
    %c0_i32 = arith.constant 0 : i32
    %c0_i32_0 = arith.constant 0 : i32
    return %arg0, %c0_i32 : i32, i32
  }
}

</mosaic_0001>

<llo_original>
// kernel: unet_innermost_block.3
$region0: #{unet_innermost_block.3}
  #allocation0 [shape = 'u32[]', space=smem, size = 0x4, offset = 0x4, fixed_abs, tag = 'smem constant byte address 0x4 - core index']
  #allocation1 [shape = 'u32[144,128]{1,0:T(1,128)}', space=vmem, size = 0x12000, scoped, tag = 'internal scratch']
  %s0 = inlined_call_operand.vmem [shape: f32[128,128], index: 0, kind: input, shape index: {}]
  %s1 = inlined_call_operand.vmem [shape: f32[128,128], index: 1, kind: input, shape index: {}]
  %s2 = inlined_call_operand.vmem [shape: f32[128,128], index: 2, kind: output, shape index: {}]
  %s3 = sld [smem:[#allocation0]]
  $region18: #{unet_innermost_block.3} parent=0
    _
  %s5 = ssub.s32 1, %s3
  %s6 = scalar_select 0, %s5, %s3
  // Predicated region
  $region2: #{unet_innermost_block.3} parent=0 // pred_check
    _
  $region3: #{unet_innermost_block.3} parent=0 // pred_check_branch
    %8 = sbr.rel (0) target = $region5
  $region4: #{unet_innermost_block.3} parent=0 // pred_region
    _
  $region5: #{unet_innermost_block.3} parent=0 // pred_fallthru
    _
  // Predicated region
  $region6: #{unet_innermost_block.3} parent=0 // pred_check
    _
  $region7: #{unet_innermost_block.3} parent=0 // pred_check_branch
    %10 = sbr.rel (0) target = $region9
  $region8: #{unet_innermost_block.3} parent=0 // pred_region
    _
  $region9: #{unet_innermost_block.3} parent=0 // pred_fallthru
    _
  %v11 = vld [vmem:[%s0] sm:$0xff]
  %v12 = vld [vmem:[%s0 + $0x8] sm:$0xff]
  %v13 = vld [vmem:[%s0 + $0x10] sm:$0xff]
  %v14 = vld [vmem:[%s0 + $0x18] sm:$0xff]
  %v15 = vld [vmem:[%s0 + $0x20] sm:$0xff]
  %v16 = vld [vmem:[%s0 + $0x28] sm:$0xff]
  %v17 = vld [vmem:[%s0 + $0x30] sm:$0xff]
  %v18 = vld [vmem:[%s0 + $0x38] sm:$0xff]
  %v19 = vld [vmem:[%s0 + $0x40] sm:$0xff]
  %v20 = vld [vmem:[%s0 + $0x48] sm:$0xff]
  %v21 = vld [vmem:[%s0 + $0x50] sm:$0xff]
  %v22 = vld [vmem:[%s0 + $0x58] sm:$0xff]
  %v23 = vld [vmem:[%s0 + $0x60] sm:$0xff]
  %v24 = vld [vmem:[%s0 + $0x68] sm:$0xff]
  %v25 = vld [vmem:[%s0 + $0x70] sm:$0xff]
  %v26 = vld [vmem:[%s0 + $0x78] sm:$0xff]
  %vm27 = vcmp.ge.f32.partialorder %v11, 0.0
  %vm28 = vcmp.ge.f32.partialorder %v12, 0.0
  %vm29 = vcmp.ge.f32.partialorder %v13, 0.0
  %vm30 = vcmp.ge.f32.partialorder %v14, 0.0
  %vm31 = vcmp.ge.f32.partialorder %v15, 0.0
  %vm32 = vcmp.ge.f32.partialorder %v16, 0.0
  %vm33 = vcmp.ge.f32.partialorder %v17, 0.0
  %vm34 = vcmp.ge.f32.partialorder %v18, 0.0
  %vm35 = vcmp.ge.f32.partialorder %v19, 0.0
  %vm36 = vcmp.ge.f32.partialorder %v20, 0.0
  %vm37 = vcmp.ge.f32.partialorder %v21, 0.0
  %vm38 = vcmp.ge.f32.partialorder %v22, 0.0
  %vm39 = vcmp.ge.f32.partialorder %v23, 0.0
  %vm40 = vcmp.ge.f32.partialorder %v24, 0.0
  %vm41 = vcmp.ge.f32.partialorder %v25, 0.0
  %vm42 = vcmp.ge.f32.partialorder %v26, 0.0
  %v43 = vmul.f32 %v11, 0.2
  %v44 = vmul.f32 %v12, 0.2
  %v45 = vmul.f32 %v13, 0.2
  %v46 = vmul.f32 %v14, 0.2
  %v47 = vmul.f32 %v15, 0.2
  %v48 = vmul.f32 %v16, 0.2
  %v49 = vmul.f32 %v17, 0.2
  %v50 = vmul.f32 %v18, 0.2
  %v51 = vmul.f32 %v19, 0.2
  %v52 = vmul.f32 %v20, 0.2
  %v53 = vmul.f32 %v21, 0.2
  %v54 = vmul.f32 %v22, 0.2
  %v55 = vmul.f32 %v23, 0.2
  %v56 = vmul.f32 %v24, 0.2
  %v57 = vmul.f32 %v25, 0.2
  %v58 = vmul.f32 %v26, 0.2
  %v59 = vsel %vm27, %v11, %v43
  %v60 = vsel %vm28, %v12, %v44
  %v61 = vsel %vm29, %v13, %v45
  %v62 = vsel %vm30, %v14, %v46
  %v63 = vsel %vm31, %v15, %v47
  %v64 = vsel %vm32, %v16, %v48
  %v65 = vsel %vm33, %v17, %v49
  %v66 = vsel %vm34, %v18, %v50
  %v67 = vsel %vm35, %v19, %v51
  %v68 = vsel %vm36, %v20, %v52
  %v69 = vsel %vm37, %v21, %v53
  %v70 = vsel %vm38, %v22, %v54
  %v71 = vsel %vm39, %v23, %v55
  %v72 = vsel %vm40, %v24, %v56
  %v73 = vsel %vm41, %v25, %v57
  %v74 = vsel %vm42, %v26, %v58
  %v75 = vld [vmem:[%s1] sm:$0xff]
  %v76 = vld [vmem:[%s1 + $0x8] sm:$0xff]
  %v77 = vld [vmem:[%s1 + $0x10] sm:$0xff]
  %v78 = vld [vmem:[%s1 + $0x18] sm:$0xff]
  %v79 = vld [vmem:[%s1 + $0x20] sm:$0xff]
  %v80 = vld [vmem:[%s1 + $0x28] sm:$0xff]
  %v81 = vld [vmem:[%s1 + $0x30] sm:$0xff]
  %v82 = vld [vmem:[%s1 + $0x38] sm:$0xff]
  %v83 = vld [vmem:[%s1 + $0x40] sm:$0xff]
  %v84 = vld [vmem:[%s1 + $0x48] sm:$0xff]
  %v85 = vld [vmem:[%s1 + $0x50] sm:$0xff]
  %v86 = vld [vmem:[%s1 + $0x58] sm:$0xff]
  %v87 = vld [vmem:[%s1 + $0x60] sm:$0xff]
  %v88 = vld [vmem:[%s1 + $0x68] sm:$0xff]
  %v89 = vld [vmem:[%s1 + $0x70] sm:$0xff]
  %v90 = vld [vmem:[%s1 + $0x78] sm:$0xff]
  %91 = vmatprep.subr.mxu0 0.0
  %92 = vmatpush1.msra.mxu0 %v90
  %93 = vmatprep.subr.mxu0 0.0
  %94 = vmatpush1.msra.mxu0 %v89
  %95 = vmatprep.subr.mxu0 0.0
  %96 = vmatpush1.msra.mxu0 %v88
  %97 = vmatprep.subr.mxu0 0.0
  %98 = vmatpush1.msra.mxu0 %v87
  %99 = vmatprep.subr.mxu0 0.0
  %100 = vmatpush1.msra.mxu0 %v86
  %101 = vmatprep.subr.mxu0 0.0
  %102 = vmatpush1.msra.mxu0 %v85
  %103 = vmatprep.subr.mxu0 0.0
  %104 = vmatpush1.msra.mxu0 %v84
  %105 = vmatprep.subr.mxu0 0.0
  %106 = vmatpush1.msra.mxu0 %v83
  %107 = vmatprep.subr.mxu0 0.0
  %108 = vmatpush1.msra.mxu0 %v82
  %109 = vmatprep.subr.mxu0 0.0
  %110 = vmatpush1.msra.mxu0 %v81
  %111 = vmatprep.subr.mxu0 0.0
  %112 = vmatpush1.msra.mxu0 %v80
  %113 = vmatprep.subr.mxu0 0.0
  %114 = vmatpush1.msra.mxu0 %v79
  %115 = vmatprep.subr.mxu0 0.0
  %116 = vmatpush1.msra.mxu0 %v78
  %117 = vmatprep.subr.mxu0 0.0
  %118 = vmatpush1.msra.mxu0 %v77
  %119 = vmatprep.subr.mxu0 0.0
  %120 = vmatpush1.msra.mxu0 %v76
  %121 = vmatprep.subr.mxu0 0.0
  %122 = vmatpush1.msra.mxu0 %v75
  %123 = vmatprep.subr.mxu0 0.0
  %124 = vmatpush2.msra.mxu0 0.0
  %125 = vmatprep.subr.mxu0 0.0
  %126 = vmatpush2.msra.mxu0 0.0
  %127 = vmatprep.subr.mxu0 0.0
  %128 = vmatpush2.msra.mxu0 0.0
  %129 = vmatprep.subr.mxu0 0.0
  %130 = vmatpush2.msra.mxu0 0.0
  %131 = vmatprep.subr.mxu0 0.0
  %132 = vmatpush2.msra.mxu0 0.0
  %133 = vmatprep.subr.mxu0 0.0
  %134 = vmatpush2.msra.mxu0 0.0
  %135 = vmatprep.subr.mxu0 0.0
  %136 = vmatpush2.msra.mxu0 0.0
  %137 = vmatprep.subr.mxu0 0.0
  %138 = vmatpush2.msra.mxu0 0.0
  %139 = vmatprep.subr.mxu0 0.0
  %140 = vmatpush2.msra.mxu0 0.0
  %141 = vmatprep.subr.mxu0 0.0
  %142 = vmatpush2.msra.mxu0 0.0
  %143 = vmatprep.subr.mxu0 0.0
  %144 = vmatpush2.msra.mxu0 0.0
  %145 = vmatprep.subr.mxu0 0.0
  %146 = vmatpush2.msra.mxu0 0.0
  %147 = vmatprep.subr.mxu0 0.0
  %148 = vmatpush2.msra.mxu0 0.0
  %149 = vmatprep.subr.mxu0 0.0
  %150 = vmatpush2.msra.mxu0 0.0
  %151 = vmatprep.subr.mxu0 0.0
  %152 = vmatpush2.msra.mxu0 0.0
  %153 = vmatprep.subr.mxu0 0.0
  %154 = vmatpush2.msra.mxu0 0.0
  %155 = vmatprep.mubr.f32.mxu0 0.0
  %156 = vmatmul.mubr.f32.gmra.mxu0 %v59
  %v157 = vpop.f32.mrf.mxu0
  %v158 = vadd.f32 0.0, %v157
  %v159 = vpop.f32.mrf.mxu0
  %160 = vmatprep.mubr.f32.mxu0 0.0
  %161 = vmatmul.mubr.f32.gmra.mxu0 %v60
  %v162 = vpop.f32.mrf.mxu0
  %v163 = vadd.f32 0.0, %v162
  %v164 = vpop.f32.mrf.mxu0
  %165 = vmatprep.mubr.f32.mxu0 0.0
  %166 = vmatmul.mubr.f32.gmra.mxu0 %v61
  %v167 = vpop.f32.mrf.mxu0
  %v168 = vadd.f32 0.0, %v167
  %v169 = vpop.f32.mrf.mxu0
  %170 = vmatprep.mubr.f32.mxu0 0.0
  %171 = vmatmul.mubr.f32.gmra.mxu0 %v62
  %v172 = vpop.f32.mrf.mxu0
  %v173 = vadd.f32 0.0, %v172
  %v174 = vpop.f32.mrf.mxu0
  %175 = vmatprep.mubr.f32.mxu0 0.0
  %176 = vmatmul.mubr.f32.gmra.mxu0 %v63
  %v177 = vpop.f32.mrf.mxu0
  %v178 = vadd.f32 0.0, %v177
  %v179 = vpop.f32.mrf.mxu0
  %180 = vmatprep.mubr.f32.mxu0 0.0
  %181 = vmatmul.mubr.f32.gmra.mxu0 %v64
  %v182 = vpop.f32.mrf.mxu0
  %v183 = vadd.f32 0.0, %v182
  %v184 = vpop.f32.mrf.mxu0
  %185 = vmatprep.mubr.f32.mxu0 0.0
  %186 = vmatmul.mubr.f32.gmra.mxu0 %v65
  %v187 = vpop.f32.mrf.mxu0
  %v188 = vadd.f32 0.0, %v187
  %v189 = vpop.f32.mrf.mxu0
  %190 = vmatprep.mubr.f32.mxu0 0.0
  %191 = vmatmul.mubr.f32.gmra.mxu0 %v66
  %v192 = vpop.f32.mrf.mxu0
  %v193 = vadd.f32 0.0, %v192
  %v194 = vpop.f32.mrf.mxu0
  %195 = vmatprep.mubr.f32.mxu0 0.0
  %196 = vmatmul.mubr.f32.gmra.mxu0 %v67
  %v197 = vpop.f32.mrf.mxu0
  %v198 = vadd.f32 0.0, %v197
  %v199 = vpop.f32.mrf.mxu0
  %200 = vmatprep.mubr.f32.mxu0 0.0
  %201 = vmatmul.mubr.f32.gmra.mxu0 %v68
  %v202 = vpop.f32.mrf.mxu0
  %v203 = vadd.f32 0.0, %v202
  %v204 = vpop.f32.mrf.mxu0
  %205 = vmatprep.mubr.f32.mxu0 0.0
  %206 = vmatmul.mubr.f32.gmra.mxu0 %v69
  %v207 = vpop.f32.mrf.mxu0
  %v208 = vadd.f32 0.0, %v207
  %v209 = vpop.f32.mrf.mxu0
  %210 = vmatprep.mubr.f32.mxu0 0.0
  %211 = vmatmul.mubr.f32.gmra.mxu0 %v70
  %v212 = vpop.f32.mrf.mxu0
  %v213 = vadd.f32 0.0, %v212
  %v214 = vpop.f32.mrf.mxu0
  %215 = vmatprep.mubr.f32.mxu0 0.0
  %216 = vmatmul.mubr.f32.gmra.mxu0 %v71
  %v217 = vpop.f32.mrf.mxu0
  %v218 = vadd.f32 0.0, %v217
  %v219 = vpop.f32.mrf.mxu0
  %220 = vmatprep.mubr.f32.mxu0 0.0
  %221 = vmatmul.mubr.f32.gmra.mxu0 %v72
  %v222 = vpop.f32.mrf.mxu0
  %v223 = vadd.f32 0.0, %v222
  %v224 = vpop.f32.mrf.mxu0
  %225 = vmatprep.mubr.f32.mxu0 0.0
  %226 = vmatmul.mubr.f32.gmra.mxu0 %v73
  %v227 = vpop.f32.mrf.mxu0
  %v228 = vadd.f32 0.0, %v227
  %v229 = vpop.f32.mrf.mxu0
  %230 = vmatprep.mubr.f32.mxu0 0.0
  %231 = vmatmul.mubr.f32.gmra.mxu0 %v74
  %v232 = vpop.f32.mrf.mxu0
  %v233 = vadd.f32 0.0, %v232
  %v234 = vpop.f32.mrf.mxu0
  %235 = vdwg.mxu0
  %v236 = vmax.f32 %v158, 0.0
  %v237 = vmax.f32 %v163, 0.0
  %v238 = vmax.f32 %v168, 0.0
  %v239 = vmax.f32 %v173, 0.0
  %v240 = vmax.f32 %v178, 0.0
  %v241 = vmax.f32 %v183, 0.0
  %v242 = vmax.f32 %v188, 0.0
  %v243 = vmax.f32 %v193, 0.0
  %v244 = vmax.f32 %v198, 0.0
  %v245 = vmax.f32 %v203, 0.0
  %v246 = vmax.f32 %v208, 0.0
  %v247 = vmax.f32 %v213, 0.0
  %v248 = vmax.f32 %v218, 0.0
  %v249 = vmax.f32 %v223, 0.0
  %v250 = vmax.f32 %v228, 0.0
  %v251 = vmax.f32 %v233, 0.0
  %252 = vst [vmem:[%s2] sm:$0xff] %v236
  %253 = vst [vmem:[%s2 + $0x8] sm:$0xff] %v237
  %254 = vst [vmem:[%s2 + $0x10] sm:$0xff] %v238
  %255 = vst [vmem:[%s2 + $0x18] sm:$0xff] %v239
  %256 = vst [vmem:[%s2 + $0x20] sm:$0xff] %v240
  %257 = vst [vmem:[%s2 + $0x28] sm:$0xff] %v241
  %258 = vst [vmem:[%s2 + $0x30] sm:$0xff] %v242
  %259 = vst [vmem:[%s2 + $0x38] sm:$0xff] %v243
  %260 = vst [vmem:[%s2 + $0x40] sm:$0xff] %v244
  %261 = vst [vmem:[%s2 + $0x48] sm:$0xff] %v245
  %262 = vst [vmem:[%s2 + $0x50] sm:$0xff] %v246
  %263 = vst [vmem:[%s2 + $0x58] sm:$0xff] %v247
  %264 = vst [vmem:[%s2 + $0x60] sm:$0xff] %v248
  %265 = vst [vmem:[%s2 + $0x68] sm:$0xff] %v249
  %266 = vst [vmem:[%s2 + $0x70] sm:$0xff] %v250
  %267 = vst [vmem:[%s2 + $0x78] sm:$0xff] %v251
  // Predicated region
  $region10: #{unet_innermost_block.3} parent=0 // pred_check
    _
  $region11: #{unet_innermost_block.3} parent=0 // pred_check_branch
    %269 = sbr.rel (0) target = $region13
  $region12: #{unet_innermost_block.3} parent=0 // pred_region
    _
  $region13: #{unet_innermost_block.3} parent=0 // pred_fallthru
    _
  // Predicated region
  $region14: #{unet_innermost_block.3} parent=0 // pred_check
    _
  $region15: #{unet_innermost_block.3} parent=0 // pred_check_branch
    %271 = sbr.rel (0) target = $region17
  $region16: #{unet_innermost_block.3} parent=0 // pred_region
    _
  $region17: #{unet_innermost_block.3} parent=0 // pred_fallthru
    _

// kernel: tile.13
$region0: #{tile.13}
  #allocation0 [shape = 's32[1]{0}', space=sflag, size = 0x4, scoped, tag = 'scoped memory for tile.13']
  %s0 = inlined_call_operand.vmem [shape: f32[4], index: 0, kind: input, shape index: {}]
  %s1 = inlined_call_operand.vmem [shape: f32[4,4], index: 1, kind: output, shape index: {}]
  // Predicated region
  $region2: #{tile.13} parent=0 // pred_check
    _
  $region3: #{tile.13} parent=0 // pred_check_branch
    %3 = sbr.rel (0) target = $region5
  $region4: #{tile.13} parent=0 // pred_region
    _
  $region5: #{tile.13} parent=0 // pred_fallthru
    _
  %v4 = vld [vmem:[%s0] ss:$0 sm:$0xff]
  %5 = vst [vmem:[%s1] sm:$0xf] %v4

// kernel: tile.14
$region0: #{tile.14}
  %s0 = inlined_call_operand.vmem [shape: f32[4,4], index: 0, kind: input, shape index: {}]
  %s1 = inlined_call_operand.vmem [shape: f32[16], index: 1, kind: output, shape index: {}]
  $region1: #{tile.14} parent=0
    #allocation0 [shape = 'u8[4096]{0}', space=vmem, size = 0x1000, scoped, tag = 'scoped mem for output reshape']
    #allocation1 [shape = 'u8[4096]{0}', space=vmem, size = 0x1000, scoped, tag = 'scoped mem for input reshape']
    %s3 = sshll.u32 1, 4
    %s4 = ssub.s32 %s3, 1
    %v5 = vld [vmem:[%s0] sm:%s4]
    %6 = vst [vmem:[#allocation1] sm:%s4] %v5
    %v7 = vld [vmem:[#allocation1] sm:$0x1]
    %vm8 = vcmask 31744
    %9 = vst.msk [vmem:[#allocation0] sm:$0x1] %vm8, %v7
    %s10 = scalar_lea.vmem [#allocation1], 3
    %v11 = vld [vmem:[%s10] sm:$0x1]
    %12 = vrot.lane.b32.xlu0 %v11, 12
    %v13 = vpop.permute.xlu0 %12
    %vm14 = vcmask 130144
    %15 = vst.msk [vmem:[#allocation0] sm:$0x1] %vm14, %v13
    %s16 = scalar_lea.vmem [#allocation1], 2
    %v17 = vld [vmem:[%s16] sm:$0x1]
    %18 = vrot.lane.b32.xlu0 %v17, 8
    %v19 = vpop.permute.xlu0 %18
    %vm20 = vcmask 97344
    %21 = vst.msk [vmem:[#allocation0] sm:$0x1] %vm20, %v19
    %s22 = scalar_lea.vmem [#allocation1], 1
    %v23 = vld [vmem:[%s22] sm:$0x1]
    %24 = vrot.lane.b32.xlu0 %v23, 4
    %v25 = vpop.permute.xlu0 %24
    %vm26 = vcmask 64544
    %27 = vst.msk [vmem:[#allocation0] sm:$0x1] %vm26, %v25
    %s29 = sshll.u32 1, 1
    %s30 = ssub.s32 %s29, 1
    %v32 = vld [vmem:[#allocation0] sm:%s30]
    %s33 = sshll.u32 1, 1
    %s34 = ssub.s32 %s33, 1
    %35 = vst [vmem:[%s1] sm:%s34] %v32

// kernel: unet_innermost_block.4
$region0: #{unet_innermost_block.4}
  #allocation0 [shape = 'u32[]', space=smem, size = 0x4, offset = 0x4, fixed_abs, tag = 'smem constant byte address 0x4 - core index']
  #allocation1 [shape = 'u32[144,128]{1,0:T(1,128)}', space=vmem, size = 0x12000, scoped, tag = 'internal scratch']
  %s0 = inlined_call_operand.vmem [shape: f32[128,128], index: 0, kind: input, shape index: {}]
  %s1 = inlined_call_operand.vmem [shape: f32[128,128], index: 1, kind: input, shape index: {}]
  %s2 = inlined_call_operand.vmem [shape: f32[128,128], index: 2, kind: output, shape index: {0}]
  %s3 = inlined_call_operand.vmem [shape: f32[8,128], index: 3, kind: output, shape index: {1}]
  %4 = xla_tuple %s2, %s3
  %s5 = sld [smem:[#allocation0]]
  $region26: #{unet_innermost_block.4} parent=0
    _
  %s7 = ssub.s32 1, %s5
  %s8 = scalar_select 0, %s7, %s5
  // Predicated region
  $region2: #{unet_innermost_block.4} parent=0 // pred_check
    _
  $region3: #{unet_innermost_block.4} parent=0 // pred_check_branch
    %10 = sbr.rel (0) target = $region5
  $region4: #{unet_innermost_block.4} parent=0 // pred_region
    _
  $region5: #{unet_innermost_block.4} parent=0 // pred_fallthru
    _
  // Predicated region
  $region6: #{unet_innermost_block.4} parent=0 // pred_check
    _
  $region7: #{unet_innermost_block.4} parent=0 // pred_check_branch
    %12 = sbr.rel (0) target = $region9
  $region8: #{unet_innermost_block.4} parent=0 // pred_region
    _
  $region9: #{unet_innermost_block.4} parent=0 // pred_fallthru
    _
  %v13 = vld [vmem:[%s0] sm:$0xff]
  %v14 = vld [vmem:[%s0 + $0x8] sm:$0xff]
  %v15 = vld [vmem:[%s0 + $0x10] sm:$0xff]
  %v16 = vld [vmem:[%s0 + $0x18] sm:$0xff]
  %v17 = vld [vmem:[%s0 + $0x20] sm:$0xff]
  %v18 = vld [vmem:[%s0 + $0x28] sm:$0xff]
  %v19 = vld [vmem:[%s0 + $0x30] sm:$0xff]
  %v20 = vld [vmem:[%s0 + $0x38] sm:$0xff]
  %v21 = vld [vmem:[%s0 + $0x40] sm:$0xff]
  %v22 = vld [vmem:[%s0 + $0x48] sm:$0xff]
  %v23 = vld [vmem:[%s0 + $0x50] sm:$0xff]
  %v24 = vld [vmem:[%s0 + $0x58] sm:$0xff]
  %v25 = vld [vmem:[%s0 + $0x60] sm:$0xff]
  %v26 = vld [vmem:[%s0 + $0x68] sm:$0xff]
  %v27 = vld [vmem:[%s0 + $0x70] sm:$0xff]
  %v28 = vld [vmem:[%s0 + $0x78] sm:$0xff]
  %v29 = vld [vmem:[%s1] sm:$0xff]
  %v30 = vld [vmem:[%s1 + $0x8] sm:$0xff]
  %v31 = vld [vmem:[%s1 + $0x10] sm:$0xff]
  %v32 = vld [vmem:[%s1 + $0x18] sm:$0xff]
  %v33 = vld [vmem:[%s1 + $0x20] sm:$0xff]
  %v34 = vld [vmem:[%s1 + $0x28] sm:$0xff]
  %v35 = vld [vmem:[%s1 + $0x30] sm:$0xff]
  %v36 = vld [vmem:[%s1 + $0x38] sm:$0xff]
  %v37 = vld [vmem:[%s1 + $0x40] sm:$0xff]
  %v38 = vld [vmem:[%s1 + $0x48] sm:$0xff]
  %v39 = vld [vmem:[%s1 + $0x50] sm:$0xff]
  %v40 = vld [vmem:[%s1 + $0x58] sm:$0xff]
  %v41 = vld [vmem:[%s1 + $0x60] sm:$0xff]
  %v42 = vld [vmem:[%s1 + $0x68] sm:$0xff]
  %v43 = vld [vmem:[%s1 + $0x70] sm:$0xff]
  %v44 = vld [vmem:[%s1 + $0x78] sm:$0xff]
  %45 = vmatprep.subr.mxu0 0.0
  %46 = vmatpush1.msra.mxu0 %v44
  %47 = vmatprep.subr.mxu0 0.0
  %48 = vmatpush1.msra.mxu0 %v43
  %49 = vmatprep.subr.mxu0 0.0
  %50 = vmatpush1.msra.mxu0 %v42
  %51 = vmatprep.subr.mxu0 0.0
  %52 = vmatpush1.msra.mxu0 %v41
  %53 = vmatprep.subr.mxu0 0.0
  %54 = vmatpush1.msra.mxu0 %v40
  %55 = vmatprep.subr.mxu0 0.0
  %56 = vmatpush1.msra.mxu0 %v39
  %57 = vmatprep.subr.mxu0 0.0
  %58 = vmatpush1.msra.mxu0 %v38
  %59 = vmatprep.subr.mxu0 0.0
  %60 = vmatpush1.msra.mxu0 %v37
  %61 = vmatprep.subr.mxu0 0.0
  %62 = vmatpush1.msra.mxu0 %v36
  %63 = vmatprep.subr.mxu0 0.0
  %64 = vmatpush1.msra.mxu0 %v35
  %65 = vmatprep.subr.mxu0 0.0
  %66 = vmatpush1.msra.mxu0 %v34
  %67 = vmatprep.subr.mxu0 0.0
  %68 = vmatpush1.msra.mxu0 %v33
  %69 = vmatprep.subr.mxu0 0.0
  %70 = vmatpush1.msra.mxu0 %v32
  %71 = vmatprep.subr.mxu0 0.0
  %72 = vmatpush1.msra.mxu0 %v31
  %73 = vmatprep.subr.mxu0 0.0
  %74 = vmatpush1.msra.mxu0 %v30
  %75 = vmatprep.subr.mxu0 0.0
  %76 = vmatpush1.msra.mxu0 %v29
  %77 = vmatprep.subr.mxu0 0.0
  %78 = vmatpush2.msra.mxu0 0.0
  %79 = vmatprep.subr.mxu0 0.0
  %80 = vmatpush2.msra.mxu0 0.0
  %81 = vmatprep.subr.mxu0 0.0
  %82 = vmatpush2.msra.mxu0 0.0
  %83 = vmatprep.subr.mxu0 0.0
  %84 = vmatpush2.msra.mxu0 0.0
  %85 = vmatprep.subr.mxu0 0.0
  %86 = vmatpush2.msra.mxu0 0.0
  %87 = vmatprep.subr.mxu0 0.0
  %88 = vmatpush2.msra.mxu0 0.0
  %89 = vmatprep.subr.mxu0 0.0
  %90 = vmatpush2.msra.mxu0 0.0
  %91 = vmatprep.subr.mxu0 0.0
  %92 = vmatpush2.msra.mxu0 0.0
  %93 = vmatprep.subr.mxu0 0.0
  %94 = vmatpush2.msra.mxu0 0.0
  %95 = vmatprep.subr.mxu0 0.0
  %96 = vmatpush2.msra.mxu0 0.0
  %97 = vmatprep.subr.mxu0 0.0
  %98 = vmatpush2.msra.mxu0 0.0
  %99 = vmatprep.subr.mxu0 0.0
  %100 = vmatpush2.msra.mxu0 0.0
  %101 = vmatprep.subr.mxu0 0.0
  %102 = vmatpush2.msra.mxu0 0.0
  %103 = vmatprep.subr.mxu0 0.0
  %104 = vmatpush2.msra.mxu0 0.0
  %105 = vmatprep.subr.mxu0 0.0
  %106 = vmatpush2.msra.mxu0 0.0
  %107 = vmatprep.subr.mxu0 0.0
  %108 = vmatpush2.msra.mxu0 0.0
  %109 = vmatprep.mubr.f32.mxu0 0.0
  %110 = vmatmul.mubr.f32.gmra.mxu0 %v13
  %v111 = vpop.f32.mrf.mxu0
  %v112 = vadd.f32 0.0, %v111
  %v113 = vpop.f32.mrf.mxu0
  %114 = vmatprep.mubr.f32.mxu0 0.0
  %115 = vmatmul.mubr.f32.gmra.mxu0 %v14
  %v116 = vpop.f32.mrf.mxu0
  %v117 = vadd.f32 0.0, %v116
  %v118 = vpop.f32.mrf.mxu0
  %119 = vmatprep.mubr.f32.mxu0 0.0
  %120 = vmatmul.mubr.f32.gmra.mxu0 %v15
  %v121 = vpop.f32.mrf.mxu0
  %v122 = vadd.f32 0.0, %v121
  %v123 = vpop.f32.mrf.mxu0
  %124 = vmatprep.mubr.f32.mxu0 0.0
  %125 = vmatmul.mubr.f32.gmra.mxu0 %v16
  %v126 = vpop.f32.mrf.mxu0
  %v127 = vadd.f32 0.0, %v126
  %v128 = vpop.f32.mrf.mxu0
  %129 = vmatprep.mubr.f32.mxu0 0.0
  %130 = vmatmul.mubr.f32.gmra.mxu0 %v17
  %v131 = vpop.f32.mrf.mxu0
  %v132 = vadd.f32 0.0, %v131
  %v133 = vpop.f32.mrf.mxu0
  %134 = vmatprep.mubr.f32.mxu0 0.0
  %135 = vmatmul.mubr.f32.gmra.mxu0 %v18
  %v136 = vpop.f32.mrf.mxu0
  %v137 = vadd.f32 0.0, %v136
  %v138 = vpop.f32.mrf.mxu0
  %139 = vmatprep.mubr.f32.mxu0 0.0
  %140 = vmatmul.mubr.f32.gmra.mxu0 %v19
  %v141 = vpop.f32.mrf.mxu0
  %v142 = vadd.f32 0.0, %v141
  %v143 = vpop.f32.mrf.mxu0
  %144 = vmatprep.mubr.f32.mxu0 0.0
  %145 = vmatmul.mubr.f32.gmra.mxu0 %v20
  %v146 = vpop.f32.mrf.mxu0
  %v147 = vadd.f32 0.0, %v146
  %v148 = vpop.f32.mrf.mxu0
  %149 = vmatprep.mubr.f32.mxu0 0.0
  %150 = vmatmul.mubr.f32.gmra.mxu0 %v21
  %v151 = vpop.f32.mrf.mxu0
  %v152 = vadd.f32 0.0, %v151
  %v153 = vpop.f32.mrf.mxu0
  %154 = vmatprep.mubr.f32.mxu0 0.0
  %155 = vmatmul.mubr.f32.gmra.mxu0 %v22
  %v156 = vpop.f32.mrf.mxu0
  %v157 = vadd.f32 0.0, %v156
  %v158 = vpop.f32.mrf.mxu0
  %159 = vmatprep.mubr.f32.mxu0 0.0
  %160 = vmatmul.mubr.f32.gmra.mxu0 %v23
  %v161 = vpop.f32.mrf.mxu0
  %v162 = vadd.f32 0.0, %v161
  %v163 = vpop.f32.mrf.mxu0
  %164 = vmatprep.mubr.f32.mxu0 0.0
  %165 = vmatmul.mubr.f32.gmra.mxu0 %v24
  %v166 = vpop.f32.mrf.mxu0
  %v167 = vadd.f32 0.0, %v166
  %v168 = vpop.f32.mrf.mxu0
  %169 = vmatprep.mubr.f32.mxu0 0.0
  %170 = vmatmul.mubr.f32.gmra.mxu0 %v25
  %v171 = vpop.f32.mrf.mxu0
  %v172 = vadd.f32 0.0, %v171
  %v173 = vpop.f32.mrf.mxu0
  %174 = vmatprep.mubr.f32.mxu0 0.0
  %175 = vmatmul.mubr.f32.gmra.mxu0 %v26
  %v176 = vpop.f32.mrf.mxu0
  %v177 = vadd.f32 0.0, %v176
  %v178 = vpop.f32.mrf.mxu0
  %179 = vmatprep.mubr.f32.mxu0 0.0
  %180 = vmatmul.mubr.f32.gmra.mxu0 %v27
  %v181 = vpop.f32.mrf.mxu0
  %v182 = vadd.f32 0.0, %v181
  %v183 = vpop.f32.mrf.mxu0
  %184 = vmatprep.mubr.f32.mxu0 0.0
  %185 = vmatmul.mubr.f32.gmra.mxu0 %v28
  %v186 = vpop.f32.mrf.mxu0
  %v187 = vadd.f32 0.0, %v186
  %v188 = vpop.f32.mrf.mxu0
  %189 = vdwg.mxu0
  %190 = vst [vmem:[%s2] sm:$0xff] %v112
  %191 = vst [vmem:[%s2 + $0x8] sm:$0xff] %v117
  %192 = vst [vmem:[%s2 + $0x10] sm:$0xff] %v122
  %193 = vst [vmem:[%s2 + $0x18] sm:$0xff] %v127
  %194 = vst [vmem:[%s2 + $0x20] sm:$0xff] %v132
  %195 = vst [vmem:[%s2 + $0x28] sm:$0xff] %v137
  %196 = vst [vmem:[%s2 + $0x30] sm:$0xff] %v142
  %197 = vst [vmem:[%s2 + $0x38] sm:$0xff] %v147
  %198 = vst [vmem:[%s2 + $0x40] sm:$0xff] %v152
  %199 = vst [vmem:[%s2 + $0x48] sm:$0xff] %v157
  %200 = vst [vmem:[%s2 + $0x50] sm:$0xff] %v162
  %201 = vst [vmem:[%s2 + $0x58] sm:$0xff] %v167
  %202 = vst [vmem:[%s2 + $0x60] sm:$0xff] %v172
  %203 = vst [vmem:[%s2 + $0x68] sm:$0xff] %v177
  %204 = vst [vmem:[%s2 + $0x70] sm:$0xff] %v182
  %205 = vst [vmem:[%s2 + $0x78] sm:$0xff] %v187
  %v206 = vadd.f32 %v112, %v117
  %v207 = vadd.f32 %v206, %v122
  %v208 = vadd.f32 %v207, %v127
  %v209 = vadd.f32 %v208, %v132
  %v210 = vadd.f32 %v209, %v137
  %v211 = vadd.f32 %v210, %v142
  %v212 = vadd.f32 %v211, %v147
  %v213 = vadd.f32 %v212, %v152
  %v214 = vadd.f32 %v213, %v157
  %v215 = vadd.f32 %v214, %v162
  %v216 = vadd.f32 %v215, %v167
  %v217 = vadd.f32 %v216, %v172
  %v218 = vadd.f32 %v217, %v177
  %v219 = vadd.f32 %v218, %v182
  %v220 = vadd.f32 %v219, %v187
  %v221 = vrot.slane %v220, 4
  %v222 = vadd.f32 %v220, %v221
  %v223 = vrot.slane %v222, 2
  %v224 = vadd.f32 %v222, %v223
  %v225 = vrot.slane %v224, 1
  %v226 = vadd.f32 %v224, %v225
  %v227 = vmul.f32 %v112, %v112
  %v228 = vmul.f32 %v117, %v117
  %v229 = vmul.f32 %v122, %v122
  %v230 = vmul.f32 %v127, %v127
  %v231 = vmul.f32 %v132, %v132
  %v232 = vmul.f32 %v137, %v137
  %v233 = vmul.f32 %v142, %v142
  %v234 = vmul.f32 %v147, %v147
  %v235 = vmul.f32 %v152, %v152
  %v236 = vmul.f32 %v157, %v157
  %v237 = vmul.f32 %v162, %v162
  %v238 = vmul.f32 %v167, %v167
  %v239 = vmul.f32 %v172, %v172
  %v240 = vmul.f32 %v177, %v177
  %v241 = vmul.f32 %v182, %v182
  %v242 = vmul.f32 %v187, %v187
  %v243 = vadd.f32 %v227, %v228
  %v244 = vadd.f32 %v243, %v229
  %v245 = vadd.f32 %v244, %v230
  %v246 = vadd.f32 %v245, %v231
  %v247 = vadd.f32 %v246, %v232
  %v248 = vadd.f32 %v247, %v233
  %v249 = vadd.f32 %v248, %v234
  %v250 = vadd.f32 %v249, %v235
  %v251 = vadd.f32 %v250, %v236
  %v252 = vadd.f32 %v251, %v237
  %v253 = vadd.f32 %v252, %v238
  %v254 = vadd.f32 %v253, %v239
  %v255 = vadd.f32 %v254, %v240
  %v256 = vadd.f32 %v255, %v241
  %v257 = vadd.f32 %v256, %v242
  %v258 = vrot.slane %v257, 4
  %v259 = vadd.f32 %v257, %v258
  %v260 = vrot.slane %v259, 2
  %v261 = vadd.f32 %v259, %v260
  %v262 = vrot.slane %v261, 1
  %v263 = vadd.f32 %v261, %v262
  %v264 = vlaneseq
  %v265 = vshrl.u32 %v264, 7
  %vm266 = vcmp.eq.s32.totalorder %v265, 0
  %vm267 = vcmp.eq.s32.totalorder %v265, 1
  %v268 = vsel %vm267, %v263, 0.0
  %v269 = vsel %vm266, %v226, %v268
  %270 = vst [vmem:[%s3] sm:$0xff] %v269
  // Predicated region
  $region10: #{unet_innermost_block.4} parent=0 // pred_check
    _
  $region11: #{unet_innermost_block.4} parent=0 // pred_check_branch
    %272 = sbr.rel (0) target = $region13
  $region12: #{unet_innermost_block.4} parent=0 // pred_region
    _
  $region13: #{unet_innermost_block.4} parent=0 // pred_fallthru
    _
  // Predicated region
  $region14: #{unet_innermost_block.4} parent=0 // pred_check
    _
  $region15: #{unet_innermost_block.4} parent=0 // pred_check_branch
    %274 = sbr.rel (0) target = $region17
  $region16: #{unet_innermost_block.4} parent=0 // pred_region
    _
  $region17: #{unet_innermost_block.4} parent=0 // pred_fallthru
    _
  // Predicated region
  $region18: #{unet_innermost_block.4} parent=0 // pred_check
    _
  $region19: #{unet_innermost_block.4} parent=0 // pred_check_branch
    %276 = sbr.rel (0) target = $region21
  $region20: #{unet_innermost_block.4} parent=0 // pred_region
    _
  $region21: #{unet_innermost_block.4} parent=0 // pred_fallthru
    _
  // Predicated region
  $region22: #{unet_innermost_block.4} parent=0 // pred_check
    _
  $region23: #{unet_innermost_block.4} parent=0 // pred_check_branch
    %278 = sbr.rel (0) target = $region25
  $region24: #{unet_innermost_block.4} parent=0 // pred_region
    _
  $region25: #{unet_innermost_block.4} parent=0 // pred_fallthru
    _

// kernel: unet_innermost_block.5
$region0: #{unet_innermost_block.5}
  #allocation0 [shape = 'u32[]', space=smem, size = 0x4, offset = 0x4, fixed_abs, tag = 'smem constant byte address 0x4 - core index']
  #allocation1 [shape = 'u32[144,128]{1,0:T(1,128)}', space=vmem, size = 0x12000, scoped, tag = 'internal scratch']
  %s0 = inlined_call_operand.vmem [shape: f32[128,128], index: 0, kind: input, shape index: {}]
  %s1 = inlined_call_operand.vmem [shape: f32[1,128], index: 1, kind: input, shape index: {}]
  %s2 = inlined_call_operand.vmem [shape: f32[1,128], index: 2, kind: input, shape index: {}]
  %s3 = inlined_call_operand.vmem [shape: f32[128,128], index: 3, kind: output, shape index: {}]
  %s4 = sld [smem:[#allocation0]]
  $region22: #{unet_innermost_block.5} parent=0
    _
  %s6 = ssub.s32 1, %s4
  %s7 = scalar_select 0, %s6, %s4
  // Predicated region
  $region2: #{unet_innermost_block.5} parent=0 // pred_check
    _
  $region3: #{unet_innermost_block.5} parent=0 // pred_check_branch
    %9 = sbr.rel (0) target = $region5
  $region4: #{unet_innermost_block.5} parent=0 // pred_region
    _
  $region5: #{unet_innermost_block.5} parent=0 // pred_fallthru
    _
  // Predicated region
  $region6: #{unet_innermost_block.5} parent=0 // pred_check
    _
  $region7: #{unet_innermost_block.5} parent=0 // pred_check_branch
    %11 = sbr.rel (0) target = $region9
  $region8: #{unet_innermost_block.5} parent=0 // pred_region
    _
  $region9: #{unet_innermost_block.5} parent=0 // pred_fallthru
    _
  // Predicated region
  $region10: #{unet_innermost_block.5} parent=0 // pred_check
    _
  $region11: #{unet_innermost_block.5} parent=0 // pred_check_branch
    %13 = sbr.rel (0) target = $region13
  $region12: #{unet_innermost_block.5} parent=0 // pred_region
    _
  $region13: #{unet_innermost_block.5} parent=0 // pred_fallthru
    _
  %v14 = vld [vmem:[%s0] sm:$0xff]
  %v15 = vld [vmem:[%s0 + $0x8] sm:$0xff]
  %v16 = vld [vmem:[%s0 + $0x10] sm:$0xff]
  %v17 = vld [vmem:[%s0 + $0x18] sm:$0xff]
  %v18 = vld [vmem:[%s0 + $0x20] sm:$0xff]
  %v19 = vld [vmem:[%s0 + $0x28] sm:$0xff]
  %v20 = vld [vmem:[%s0 + $0x30] sm:$0xff]
  %v21 = vld [vmem:[%s0 + $0x38] sm:$0xff]
  %v22 = vld [vmem:[%s0 + $0x40] sm:$0xff]
  %v23 = vld [vmem:[%s0 + $0x48] sm:$0xff]
  %v24 = vld [vmem:[%s0 + $0x50] sm:$0xff]
  %v25 = vld [vmem:[%s0 + $0x58] sm:$0xff]
  %v26 = vld [vmem:[%s0 + $0x60] sm:$0xff]
  %v27 = vld [vmem:[%s0 + $0x68] sm:$0xff]
  %v28 = vld [vmem:[%s0 + $0x70] sm:$0xff]
  %v29 = vld [vmem:[%s0 + $0x78] sm:$0xff]
  %v30 = vld [vmem:[%s1] sm:$0x1]
  %v32 = vlaneseq
  %v33 = vshrl.u32 %v32, 7
  %v34 = vsub.s32 0, %v33
  %v35 = vrot.slane %v30, %v34
  %v37 = vmul.f32 %v14, %v35
  %v38 = vmul.f32 %v15, %v35
  %v39 = vmul.f32 %v16, %v35
  %v40 = vmul.f32 %v17, %v35
  %v41 = vmul.f32 %v18, %v35
  %v42 = vmul.f32 %v19, %v35
  %v43 = vmul.f32 %v20, %v35
  %v44 = vmul.f32 %v21, %v35
  %v45 = vmul.f32 %v22, %v35
  %v46 = vmul.f32 %v23, %v35
  %v47 = vmul.f32 %v24, %v35
  %v48 = vmul.f32 %v25, %v35
  %v49 = vmul.f32 %v26, %v35
  %v50 = vmul.f32 %v27, %v35
  %v51 = vmul.f32 %v28, %v35
  %v52 = vmul.f32 %v29, %v35
  %v53 = vld [vmem:[%s2] sm:$0x1]
  %v55 = vlaneseq
  %v56 = vshrl.u32 %v55, 7
  %v57 = vsub.s32 0, %v56
  %v58 = vrot.slane %v53, %v57
  %v60 = vadd.f32 %v37, %v58
  %v61 = vadd.f32 %v38, %v58
  %v62 = vadd.f32 %v39, %v58
  %v63 = vadd.f32 %v40, %v58
  %v64 = vadd.f32 %v41, %v58
  %v65 = vadd.f32 %v42, %v58
  %v66 = vadd.f32 %v43, %v58
  %v67 = vadd.f32 %v44, %v58
  %v68 = vadd.f32 %v45, %v58
  %v69 = vadd.f32 %v46, %v58
  %v70 = vadd.f32 %v47, %v58
  %v71 = vadd.f32 %v48, %v58
  %v72 = vadd.f32 %v49, %v58
  %v73 = vadd.f32 %v50, %v58
  %v74 = vadd.f32 %v51, %v58
  %v75 = vadd.f32 %v52, %v58
  %76 = vst [vmem:[%s3] sm:$0xff] %v60
  %77 = vst [vmem:[%s3 + $0x8] sm:$0xff] %v61
  %78 = vst [vmem:[%s3 + $0x10] sm:$0xff] %v62
  %79 = vst [vmem:[%s3 + $0x18] sm:$0xff] %v63
  %80 = vst [vmem:[%s3 + $0x20] sm:$0xff] %v64
  %81 = vst [vmem:[%s3 + $0x28] sm:$0xff] %v65
  %82 = vst [vmem:[%s3 + $0x30] sm:$0xff] %v66
  %83 = vst [vmem:[%s3 + $0x38] sm:$0xff] %v67
  %84 = vst [vmem:[%s3 + $0x40] sm:$0xff] %v68
  %85 = vst [vmem:[%s3 + $0x48] sm:$0xff] %v69
  %86 = vst [vmem:[%s3 + $0x50] sm:$0xff] %v70
  %87 = vst [vmem:[%s3 + $0x58] sm:$0xff] %v71
  %88 = vst [vmem:[%s3 + $0x60] sm:$0xff] %v72
  %89 = vst [vmem:[%s3 + $0x68] sm:$0xff] %v73
  %90 = vst [vmem:[%s3 + $0x70] sm:$0xff] %v74
  %91 = vst [vmem:[%s3 + $0x78] sm:$0xff] %v75
  // Predicated region
  $region14: #{unet_innermost_block.5} parent=0 // pred_check
    _
  $region15: #{unet_innermost_block.5} parent=0 // pred_check_branch
    %93 = sbr.rel (0) target = $region17
  $region16: #{unet_innermost_block.5} parent=0 // pred_region
    _
  $region17: #{unet_innermost_block.5} parent=0 // pred_fallthru
    _
  // Predicated region
  $region18: #{unet_innermost_block.5} parent=0 // pred_check
    _
  $region19: #{unet_innermost_block.5} parent=0 // pred_check_branch
    %95 = sbr.rel (0) target = $region21
  $region20: #{unet_innermost_block.5} parent=0 // pred_region
    _
  $region21: #{unet_innermost_block.5} parent=0 // pred_fallthru
    _

</llo_original>
